<compile_context>
chip_gen: v7x
topology: tpu7x:2x2x1
jax: 0.10.0
libtpu: 0.0.40
codegen_flags: <defaults>
</compile_context>

<pallas_src>
import functools
import math

import jax
import jax.numpy as jnp
from jax.experimental import pallas as pl
from jax.experimental.pallas import tpu as pltpu

LANE = 128          # lane-dense width for hidden + output slabs
SUB = 16            # sublane packing for bf16 blocks
TARGET_TILE_B = 4096


def _round_up(x, m):
    return ((x + m - 1) // m) * m


def _cdiv(a, b):
    return (a + b - 1) // b


def mlp_kernel(x_ref, w1_ref, b1_ref, w2_ref, b2_ref, o_ref, *, n_valid_out):
    # x_ref:  (TILE_B, 784) bf16    w1_ref: (784, 128) bf16   b1_ref: (1, 128) f32
    # w2_ref: (128, 128) f32        b2_ref: (1, 128) f32      o_ref:  (TILE_B, 128) bf16
    x = x_ref[...]

    # fc1 + relu (bf16 MXU matmul, f32 accumulate). Padded hidden lanes stay 0.
    h = jnp.dot(x, w1_ref[...], preferred_element_type=jnp.float32) + b1_ref[...]
    h = jnp.maximum(h, 0.0)

    # fc2 + relu on the zero-padded (128, 128) weight slab (lane-dense output).
    z = jnp.dot(h, w2_ref[...], preferred_element_type=jnp.float32) + b2_ref[...]
    z = jnp.maximum(z, 0.0)

    # Mask the padded output lanes (>= n_valid_out), then stable log_softmax in f32.
    col = jax.lax.broadcasted_iota(jnp.int32, z.shape, 1)
    z = jnp.where(col < n_valid_out, z, -1e30)
    m = jnp.max(z, axis=-1, keepdims=True)
    s = z - m
    lse = jnp.log(jnp.sum(jnp.exp(s), axis=-1, keepdims=True))
    o_ref[...] = (s - lse).astype(o_ref.dtype)


def prepare_params(w1, b1, w2, b2):
    """One-time param prep: pad hidden 20->128, output 10->128, cast fc1 to bf16."""
    in_features, hidden = w1.shape            # (784, 20)
    out_size = w2.shape[1]                    # 10
    w1p = (jnp.zeros((in_features, LANE), jnp.bfloat16)
           .at[:, :hidden].set(w1.astype(jnp.bfloat16)))
    b1p = jnp.zeros((1, LANE), jnp.float32).at[:, :hidden].set(b1.reshape(1, -1))
    w2p = jnp.zeros((LANE, LANE), jnp.float32).at[:hidden, :out_size].set(w2)
    b2p = jnp.zeros((1, LANE), jnp.float32).at[:, :out_size].set(b2.reshape(1, -1))
    return w1p, b1p, w2p, b2p, out_size


@functools.partial(jax.jit, static_argnames=("out_size",))
def mlp_forward(x_nchw, w1p, b1p, w2p, b2p, *, out_size):
    B = x_nchw.shape[0]
    in_features = w1p.shape[0]                # 784

    # Flatten NCHW -> (B, 784) == x.view(-1, 28*28); stream as bf16 (halves HBM read).
    x2d = x_nchw.reshape(B, -1).astype(jnp.bfloat16)

    # Batch tiling: big tiles for pipeline-overhead amortization, but force >= 2
    # (even) tiles whenever possible so both v7x TensorCores get balanced work.
    B16 = _round_up(B, SUB)
    if B16 <= 2 * SUB:
        tile_b = B16
    else:
        n_tiles = max(2, _cdiv(B16, TARGET_TILE_B))
        if n_tiles % 2:
            n_tiles += 1
        tile_b = _round_up(_cdiv(B16, n_tiles), SUB)
    n_tiles = _cdiv(B16, tile_b)
    Bp = n_tiles * tile_b
    if Bp != B:
        x2d = jnp.pad(x2d, ((0, Bp - B), (0, 0)))

    cost = pl.CostEstimate(
        flops=2 * Bp * (in_features * LANE + LANE * LANE),
        transcendentals=Bp * LANE,
        bytes_accessed=(Bp * in_features * 2 + Bp * LANE * 2     # bf16 x in, bf16 out
                        + in_features * LANE * 2                 # bf16 w1
                        + LANE * LANE * 4 + 2 * LANE * 4),       # f32 w2 + biases
    )

    out = pl.pallas_call(
        functools.partial(mlp_kernel, n_valid_out=out_size),
        out_shape=jax.ShapeDtypeStruct((Bp, LANE), jnp.bfloat16),
        grid=(n_tiles,),
        in_specs=[
            pl.BlockSpec((tile_b, in_features), lambda i: (i, 0)),  # streamed per tile
            pl.BlockSpec((in_features, LANE), lambda i: (0, 0)),    # resident weights
            pl.BlockSpec((1, LANE), lambda i: (0, 0)),
            pl.BlockSpec((LANE, LANE), lambda i: (0, 0)),
            pl.BlockSpec((1, LANE), lambda i: (0, 0)),
        ],
        out_specs=pl.BlockSpec((tile_b, LANE), lambda i: (i, 0)),
        compiler_params=pltpu.CompilerParams(
            dimension_semantics=("parallel",),        # megacore sharding on v7x
            vmem_limit_bytes=48 * 1024 * 1024,        # 4096-row bf16 tiles fit easily
        ),
        cost_estimate=cost,
    )(x2d, w1p, b1p, w2p, b2p)

    # Strip batch padding, lane padding, and return f32 log-probs.
    return out[:B, :out_size].astype(jnp.float32)


def init_params(key, input_size=784, hidden=20, output_size=10):
    # Deterministic init mirroring nn.Linear's U(-1/sqrt(fan_in), 1/sqrt(fan_in)).
    k1, k2, k3, k4 = jax.random.split(key, 4)
    bound1 = 1.0 / math.sqrt(input_size)
    bound2 = 1.0 / math.sqrt(hidden)
    w1 = jax.random.uniform(k1, (input_size, hidden), jnp.float32, -bound1, bound1)
    b1 = jax.random.uniform(k2, (hidden,), jnp.float32, -bound1, bound1)
    w2 = jax.random.uniform(k3, (hidden, output_size), jnp.float32, -bound2, bound2)
    b2 = jax.random.uniform(k4, (output_size,), jnp.float32, -bound2, bound2)
    return w1, b1, w2, b2


if __name__ == "__main__":
    key = jax.random.PRNGKey(0)
    kx, kp = jax.random.split(key)

    # Small deterministic input consistent with the module: (B, 1, 28, 28) NCHW.
    x = jax.random.normal(kx, (2, 1, 28, 28), jnp.float32)
    w1, b1, w2, b2 = init_params(kp)

    w1p, b1p, w2p, b2p, out_size = prepare_params(w1, b1, w2, b2)  # hoisted, done once
    out = mlp_forward(x, w1p, b1p, w2p, b2p, out_size=out_size)
    jax.block_until_ready(out)

    # Reference check. Kernel streams x / fc1 weights in bf16 and writes bf16, so:
    #  (a) tight check against an f32 reference fed the same bf16-rounded inputs,
    #  (b) loose check against the pure-f32 reference,
    #  (c) log-prob rows must (approximately) normalize.
    x2d = x.reshape(2, -1)
    xb = x2d.astype(jnp.bfloat16).astype(jnp.float32)
    w1b = w1.astype(jnp.bfloat16).astype(jnp.float32)
    h_m = jnp.maximum(xb @ w1b + b1, 0.0)
    z_m = jnp.maximum(h_m @ w2 + b2, 0.0)
    ref_matched = jax.nn.log_softmax(z_m, axis=-1)

    h_f = jnp.maximum(x2d @ w1 + b1, 0.0)
    z_f = jnp.maximum(h_f @ w2 + b2, 0.0)
    ref_f32 = jax.nn.log_softmax(z_f, axis=-1)

    assert out.shape == (2, 10)
    assert bool(jnp.max(jnp.abs(out - ref_matched)) < 3e-2)   # bf16 output rounding
    assert bool(jnp.max(jnp.abs(out - ref_f32)) < 1e-1)       # overall semantics
    row_sums = jnp.sum(jnp.exp(out), axis=1)
    assert bool(jnp.all(jnp.abs(row_sums - 1.0) < 2e-2))

    print("KERNEL_OK")
</pallas_src>

<mosaic_0001>
module attributes {stable_mosaic.version = 11 : i64} {
  func.func @mlp_kernel(%arg0: i32, %arg1: memref<16x784xbf16, #tpu.memory_space<vmem>>, %arg2: memref<784x128xbf16, #tpu.memory_space<vmem>>, %arg3: memref<1x128xf32, #tpu.memory_space<vmem>>, %arg4: memref<128x128xf32, #tpu.memory_space<vmem>>, %arg5: memref<1x128xf32, #tpu.memory_space<vmem>>, %arg6: memref<16x128xbf16, #tpu.memory_space<vmem>>) attributes {dimension_semantics = [#tpu.dimension_semantics<parallel>], iteration_bounds = array<i64: 1>, scalar_prefetch = 0 : i64, scratch_operands = 0 : i64, tpu.core_type = #tpu.core_type<tc>, window_params = [{transform_indices = @transform_0, window_bounds = array<i64: 16, 784>}, {pipeline_mode = #tpu.pipeline_mode<synchronous>, transform_indices = @transform_1, window_bounds = array<i64: 784, 128>}, {pipeline_mode = #tpu.pipeline_mode<synchronous>, transform_indices = @transform_2, window_bounds = array<i64: 1, 128>}, {pipeline_mode = #tpu.pipeline_mode<synchronous>, transform_indices = @transform_3, window_bounds = array<i64: 128, 128>}, {pipeline_mode = #tpu.pipeline_mode<synchronous>, transform_indices = @transform_4, window_bounds = array<i64: 1, 128>}, {transform_indices = @transform_5, window_bounds = array<i64: 16, 128>}]} {
    %c0 = arith.constant 0 : index
    %c0_0 = arith.constant 0 : index
    %0 = vector.load %arg1[%c0, %c0_0] : memref<16x784xbf16, #tpu.memory_space<vmem>>, vector<16x784xbf16>
    %c0_1 = arith.constant 0 : index
    %c0_2 = arith.constant 0 : index
    %1 = vector.load %arg2[%c0_1, %c0_2] : memref<784x128xbf16, #tpu.memory_space<vmem>>, vector<784x128xbf16>
    %cst = arith.constant dense<0.000000e+00> : vector<16x128xf32>
    %2 = tpu.matmul %0, %1, %cst {dimension_numbers = #tpu.dot_dimension_numbers<[1], [0], [0], [1], [0, 0, 1, 1], [], []>} : vector<16x784xbf16>, vector<784x128xbf16>, vector<16x128xf32> -> vector<16x128xf32>
    %c0_3 = arith.constant 0 : index
    %c0_4 = arith.constant 0 : index
    %3 = vector.load %arg3[%c0_3, %c0_4] : memref<1x128xf32, #tpu.memory_space<vmem>>, vector<1x128xf32>
    %4 = vector.broadcast %3 : vector<1x128xf32> to vector<16x128xf32>
    %5 = arith.addf %2, %4 : vector<16x128xf32>
    %cst_5 = arith.constant 0.000000e+00 : f32
    %6 = vector.broadcast %cst_5 : f32 to vector<16x128xf32>
    %7 = arith.maximumf %5, %6 : vector<16x128xf32>
    %c0_6 = arith.constant 0 : index
    %c0_7 = arith.constant 0 : index
    %8 = vector.load %arg4[%c0_6, %c0_7] : memref<128x128xf32, #tpu.memory_space<vmem>>, vector<128x128xf32>
    %cst_8 = arith.constant dense<0.000000e+00> : vector<16x128xf32>
    %9 = tpu.matmul %7, %8, %cst_8 {dimension_numbers = #tpu.dot_dimension_numbers<[1], [0], [0], [1], [0, 0, 1, 1], [], []>} : vector<16x128xf32>, vector<128x128xf32>, vector<16x128xf32> -> vector<16x128xf32>
    %c0_9 = arith.constant 0 : index
    %c0_10 = arith.constant 0 : index
    %10 = vector.load %arg5[%c0_9, %c0_10] : memref<1x128xf32, #tpu.memory_space<vmem>>, vector<1x128xf32>
    %11 = vector.broadcast %10 : vector<1x128xf32> to vector<16x128xf32>
    %12 = arith.addf %9, %11 : vector<16x128xf32>
    %cst_11 = arith.constant 0.000000e+00 : f32
    %13 = vector.broadcast %cst_11 : f32 to vector<16x128xf32>
    %14 = arith.maximumf %12, %13 : vector<16x128xf32>
    %15 = tpu.iota {dimensions = array<i32: 1>} : vector<16x128xi32>
    %c10_i32 = arith.constant 10 : i32
    %16 = vector.broadcast %c10_i32 : i32 to vector<16x128xi32>
    %17 = arith.cmpi slt, %15, %16 : vector<16x128xi32>
    %cst_12 = arith.constant -1.000000e+30 : f32
    %18 = vector.broadcast %cst_12 : f32 to vector<16x128xf32>
    %19 = arith.select %17, %14, %18 : vector<16x128xi1>, vector<16x128xf32>
    %cst_13 = arith.constant dense<0xFF800000> : vector<16xf32>
    %20 = vector.multi_reduction <maximumf>, %19, %cst_13 [1] : vector<16x128xf32> to vector<16xf32>
    %21 = vector.shape_cast %20 : vector<16xf32> to vector<16x1xf32>
    %22 = vector.broadcast %21 : vector<16x1xf32> to vector<16x128xf32>
    %23 = arith.subf %19, %22 : vector<16x128xf32>
    %24 = math.exp %23 : vector<16x128xf32>
    %cst_14 = arith.constant dense<0.000000e+00> : vector<16xf32>
    %25 = vector.multi_reduction <add>, %24, %cst_14 [1] : vector<16x128xf32> to vector<16xf32>
    %26 = vector.shape_cast %25 : vector<16xf32> to vector<16x1xf32>
    %27 = math.log %26 : vector<16x1xf32>
    %28 = vector.broadcast %27 : vector<16x1xf32> to vector<16x128xf32>
    %29 = arith.subf %23, %28 : vector<16x128xf32>
    %30 = arith.truncf %29 : vector<16x128xf32> to vector<16x128xbf16>
    %c0_15 = arith.constant 0 : index
    %c0_16 = arith.constant 0 : index
    %31 = vector.load %arg6[%c0_15, %c0_16] : memref<16x128xbf16, #tpu.memory_space<vmem>>, vector<16x128xbf16>
    tpu.vector_store %arg6[%c0_15, %c0_16], %30 {strides = array<i32>} : memref<16x128xbf16, #tpu.memory_space<vmem>>, vector<16x128xbf16>,
    return
  }
  func.func @transform_0(%arg0: i32) -> (i32, i32) {
    %c0_i32 = arith.constant 0 : i32
    %c0_i32_0 = arith.constant 0 : i32
    return %arg0, %c0_i32 : i32, i32
  }
  func.func @transform_1(%arg0: i32) -> (i32, i32) {
    %c0_i32 = arith.constant 0 : i32
    %c0_i32_0 = arith.constant 0 : i32
    %c0_i32_1 = arith.constant 0 : i32
    return %c0_i32, %c0_i32_0 : i32, i32
  }
  func.func @transform_2(%arg0: i32) -> (i32, i32) {
    %c0_i32 = arith.constant 0 : i32
    %c0_i32_0 = arith.constant 0 : i32
    %c0_i32_1 = arith.constant 0 : i32
    return %c0_i32, %c0_i32_0 : i32, i32
  }
  func.func @transform_3(%arg0: i32) -> (i32, i32) {
    %c0_i32 = arith.constant 0 : i32
    %c0_i32_0 = arith.constant 0 : i32
    %c0_i32_1 = arith.constant 0 : i32
    return %c0_i32, %c0_i32_0 : i32, i32
  }
  func.func @transform_4(%arg0: i32) -> (i32, i32) {
    %c0_i32 = arith.constant 0 : i32
    %c0_i32_0 = arith.constant 0 : i32
    %c0_i32_1 = arith.constant 0 : i32
    return %c0_i32, %c0_i32_0 : i32, i32
  }
  func.func @transform_5(%arg0: i32) -> (i32, i32) {
    %c0_i32 = arith.constant 0 : i32
    %c0_i32_0 = arith.constant 0 : i32
    return %arg0, %c0_i32 : i32, i32
  }
}

</mosaic_0001>

<llo_original>
// kernel: mlp_forward.1
$region0: #{mlp_forward.1}
  #allocation0 [shape = 'u32[]', space=smem, size = 0x4, offset = 0x4, fixed_abs, tag = 'smem constant byte address 0x4 - core index']
  #allocation1 [shape = 'u32[144,128]{1,0:T(1,128)}', space=vmem, size = 0x12000, scoped, tag = 'internal scratch']
  %s0 = inlined_call_operand.vmem [shape: bf16[16,784], index: 0, kind: input, shape index: {}]
  %s1 = inlined_call_operand.hbm [shape: bf16[784,128], index: 1, kind: input, shape index: {}]
  %s2 = inlined_call_operand.vmem [shape: f32[1,128], index: 2, kind: input, shape index: {}]
  %s3 = inlined_call_operand.vmem [shape: f32[128,128], index: 3, kind: input, shape index: {}]
  %s4 = inlined_call_operand.vmem [shape: f32[1,128], index: 4, kind: input, shape index: {}]
  %s5 = inlined_call_operand.vmem [shape: bf16[16,128], index: 5, kind: output, shape index: {}]
  %s6 = sld [smem:[#allocation0]]
  $region34: #{mlp_forward.1} parent=0
    _
  %s8 = ssub.s32 1, %s6
  %s9 = scalar_select 0, %s8, %s6
  $region1: #{mlp_forward.1} parent=0
    #allocation2 [shape = 'u8[200704]{0}', space=vmem, size = 0x31000, scoped, tag = 'input window, operand 1, single buffered']
    #allocation3 [shape = 's32[1]{0}', space=sflag, size = 0x4, scoped, tag = 'scoped memory for mlp_forward.1']
    %10 = vsyncpa [#allocation3], 0
    // Predicated region
    $region2: #{mlp_forward.1} parent=1 // pred_check
      _
    $region3: #{mlp_forward.1} parent=1 // pred_check_branch
      %12 = sbr.rel (0) target = $region5
    $region4: #{mlp_forward.1} parent=1 // pred_region
      _
    $region5: #{mlp_forward.1} parent=1 // pred_fallthru
      _
    // Predicated region
    $region6: #{mlp_forward.1} parent=1 // pred_check
      _
    $region7: #{mlp_forward.1} parent=1 // pred_check_branch
      %14 = sbr.rel (0) target = $region9
    $region8: #{mlp_forward.1} parent=1 // pred_region
      %s16 = ssub.s32 6272, 6272
      %17 = vsyncadd [#allocation3], %s16
      %s18 = sshll.u32 [#allocation2], 4
      %s19 = int_to_ptr.vmem [resolvable:$true] %s18
      %24 = dma.hbm_to_vmem [thread:$0]  %s1, 6272, %s19, [#allocation3], 64, 64, 4
    $region9: #{mlp_forward.1} parent=1 // pred_fallthru
      _
    // Predicated region
    $region10: #{mlp_forward.1} parent=1 // pred_check
      _
    $region11: #{mlp_forward.1} parent=1 // pred_check_branch
      %26 = sbr.rel (0) target = $region13
    $region12: #{mlp_forward.1} parent=1 // pred_region
      _
    $region13: #{mlp_forward.1} parent=1 // pred_fallthru
      _
    // Predicated region
    $region14: #{mlp_forward.1} parent=1 // pred_check
      _
    $region15: #{mlp_forward.1} parent=1 // pred_check_branch
      %28 = sbr.rel (0) target = $region17
    $region16: #{mlp_forward.1} parent=1 // pred_region
      _
    $region17: #{mlp_forward.1} parent=1 // pred_fallthru
      _
    // Predicated region
    $region18: #{mlp_forward.1} parent=1 // pred_check
      _
    $region19: #{mlp_forward.1} parent=1 // pred_check_branch
      %30 = sbr.rel (0) target = $region21
    $region20: #{mlp_forward.1} parent=1 // pred_region
      _
    $region21: #{mlp_forward.1} parent=1 // pred_fallthru
      _
    // Predicated region
    $region22: #{mlp_forward.1} parent=1 // pred_check
      _
    $region23: #{mlp_forward.1} parent=1 // pred_check_branch
      %32 = sbr.rel (0) target = $region25
    $region24: #{mlp_forward.1} parent=1 // pred_region
      %33 = dma.done [#allocation3], 6272
    $region25: #{mlp_forward.1} parent=1 // pred_fallthru
      _
    %v35 = vld [vmem:[%s0] sm:$0xff]
    %v36 = vld [vmem:[%s0 + $0x8] sm:$0xff]
    %v37 = vld [vmem:[%s0 + $0x10] sm:$0xff]
    %v38 = vld [vmem:[%s0 + $0x18] sm:$0xf]
    %v39 = vld [vmem:[%s0 + $0x1c] sm:$0xff]
    %v40 = vld [vmem:[%s0 + $0x24] sm:$0xff]
    %v41 = vld [vmem:[%s0 + $0x2c] sm:$0xff]
    %v42 = vld [vmem:[%s0 + $0x34] sm:$0xf]
    %v43 = vld [vmem:[#allocation2] sm:$0xf]
    %v44 = vld [vmem:[#allocation2 + $0x4] sm:$0xf]
    %v45 = vld [vmem:[#allocation2 + $0x8] sm:$0xf]
    %v46 = vld [vmem:[#allocation2 + $0xc] sm:$0xf]
    %v47 = vld [vmem:[#allocation2 + $0x10] sm:$0xf]
    %v48 = vld [vmem:[#allocation2 + $0x14] sm:$0xf]
    %v49 = vld [vmem:[#allocation2 + $0x18] sm:$0xf]
    %v50 = vld [vmem:[#allocation2 + $0x1c] sm:$0xf]
    %v51 = vld [vmem:[#allocation2 + $0x20] sm:$0xf]
    %v52 = vld [vmem:[#allocation2 + $0x24] sm:$0xf]
    %v53 = vld [vmem:[#allocation2 + $0x28] sm:$0xf]
    %v54 = vld [vmem:[#allocation2 + $0x2c] sm:$0xf]
    %v55 = vld [vmem:[#allocation2 + $0x30] sm:$0xf]
    %v56 = vld [vmem:[#allocation2 + $0x34] sm:$0xf]
    %v57 = vld [vmem:[#allocation2 + $0x38] sm:$0xf]
    %v58 = vld [vmem:[#allocation2 + $0x3c] sm:$0xf]
    %v59 = vld [vmem:[#allocation2 + $0x40] sm:$0xf]
    %v60 = vld [vmem:[#allocation2 + $0x44] sm:$0xf]
    %v61 = vld [vmem:[#allocation2 + $0x48] sm:$0xf]
    %v62 = vld [vmem:[#allocation2 + $0x4c] sm:$0xf]
    %v63 = vld [vmem:[#allocation2 + $0x50] sm:$0xf]
    %v64 = vld [vmem:[#allocation2 + $0x54] sm:$0xf]
    %v65 = vld [vmem:[#allocation2 + $0x58] sm:$0xf]
    %v66 = vld [vmem:[#allocation2 + $0x5c] sm:$0xf]
    %v67 = vld [vmem:[#allocation2 + $0x60] sm:$0xf]
    %v68 = vld [vmem:[#allocation2 + $0x64] sm:$0xf]
    %v69 = vld [vmem:[#allocation2 + $0x68] sm:$0xf]
    %v70 = vld [vmem:[#allocation2 + $0x6c] sm:$0xf]
    %v71 = vld [vmem:[#allocation2 + $0x70] sm:$0xf]
    %v72 = vld [vmem:[#allocation2 + $0x74] sm:$0xf]
    %v73 = vld [vmem:[#allocation2 + $0x78] sm:$0xf]
    %v74 = vld [vmem:[#allocation2 + $0x7c] sm:$0xf]
    %v75 = vld [vmem:[#allocation2 + $0x80] sm:$0xf]
    %v76 = vld [vmem:[#allocation2 + $0x84] sm:$0xf]
    %v77 = vld [vmem:[#allocation2 + $0x88] sm:$0xf]
    %v78 = vld [vmem:[#allocation2 + $0x8c] sm:$0xf]
    %v79 = vld [vmem:[#allocation2 + $0x90] sm:$0xf]
    %v80 = vld [vmem:[#allocation2 + $0x94] sm:$0xf]
    %v81 = vld [vmem:[#allocation2 + $0x98] sm:$0xf]
    %v82 = vld [vmem:[#allocation2 + $0x9c] sm:$0xf]
    %v83 = vld [vmem:[#allocation2 + $0xa0] sm:$0xf]
    %v84 = vld [vmem:[#allocation2 + $0xa4] sm:$0xf]
    %v85 = vld [vmem:[#allocation2 + $0xa8] sm:$0xf]
    %v86 = vld [vmem:[#allocation2 + $0xac] sm:$0xf]
    %v87 = vld [vmem:[#allocation2 + $0xb0] sm:$0xf]
    %v88 = vld [vmem:[#allocation2 + $0xb4] sm:$0xf]
    %v89 = vld [vmem:[#allocation2 + $0xb8] sm:$0xf]
    %v90 = vld [vmem:[#allocation2 + $0xbc] sm:$0xf]
    %v91 = vld [vmem:[#allocation2 + $0xc0] sm:$0xf]
    %v92 = vld [vmem:[#allocation2 + $0xc4] sm:$0xf]
    %v93 = vld [vmem:[#allocation2 + $0xc8] sm:$0xf]
    %v94 = vld [vmem:[#allocation2 + $0xcc] sm:$0xf]
    %v95 = vld [vmem:[#allocation2 + $0xd0] sm:$0xf]
    %v96 = vld [vmem:[#allocation2 + $0xd4] sm:$0xf]
    %v97 = vld [vmem:[#allocation2 + $0xd8] sm:$0xf]
    %v98 = vld [vmem:[#allocation2 + $0xdc] sm:$0xf]
    %v99 = vld [vmem:[#allocation2 + $0xe0] sm:$0xf]
    %v100 = vld [vmem:[#allocation2 + $0xe4] sm:$0xf]
    %v101 = vld [vmem:[#allocation2 + $0xe8] sm:$0xf]
    %v102 = vld [vmem:[#allocation2 + $0xec] sm:$0xf]
    %v103 = vld [vmem:[#allocation2 + $0xf0] sm:$0xf]
    %v104 = vld [vmem:[#allocation2 + $0xf4] sm:$0xf]
    %v105 = vld [vmem:[#allocation2 + $0xf8] sm:$0xf]
    %v106 = vld [vmem:[#allocation2 + $0xfc] sm:$0xf]
    %v107 = vld [vmem:[#allocation2 + $0x100] sm:$0xf]
    %v108 = vld [vmem:[#allocation2 + $0x104] sm:$0xf]
    %v109 = vld [vmem:[#allocation2 + $0x108] sm:$0xf]
    %v110 = vld [vmem:[#allocation2 + $0x10c] sm:$0xf]
    %v111 = vld [vmem:[#allocation2 + $0x110] sm:$0xf]
    %v112 = vld [vmem:[#allocation2 + $0x114] sm:$0xf]
    %v113 = vld [vmem:[#allocation2 + $0x118] sm:$0xf]
    %v114 = vld [vmem:[#allocation2 + $0x11c] sm:$0xf]
    %v115 = vld [vmem:[#allocation2 + $0x120] sm:$0xf]
    %v116 = vld [vmem:[#allocation2 + $0x124] sm:$0xf]
    %v117 = vld [vmem:[#allocation2 + $0x128] sm:$0xf]
    %v118 = vld [vmem:[#allocation2 + $0x12c] sm:$0xf]
    %v119 = vld [vmem:[#allocation2 + $0x130] sm:$0xf]
    %v120 = vld [vmem:[#allocation2 + $0x134] sm:$0xf]
    %v121 = vld [vmem:[#allocation2 + $0x138] sm:$0xf]
    %v122 = vld [vmem:[#allocation2 + $0x13c] sm:$0xf]
    %v123 = vld [vmem:[#allocation2 + $0x140] sm:$0xf]
    %v124 = vld [vmem:[#allocation2 + $0x144] sm:$0xf]
    %v125 = vld [vmem:[#allocation2 + $0x148] sm:$0xf]
    %v126 = vld [vmem:[#allocation2 + $0x14c] sm:$0xf]
    %v127 = vld [vmem:[#allocation2 + $0x150] sm:$0xf]
    %v128 = vld [vmem:[#allocation2 + $0x154] sm:$0xf]
    %v129 = vld [vmem:[#allocation2 + $0x158] sm:$0xf]
    %v130 = vld [vmem:[#allocation2 + $0x15c] sm:$0xf]
    %v131 = vld [vmem:[#allocation2 + $0x160] sm:$0xf]
    %v132 = vld [vmem:[#allocation2 + $0x164] sm:$0xf]
    %v133 = vld [vmem:[#allocation2 + $0x168] sm:$0xf]
    %v134 = vld [vmem:[#allocation2 + $0x16c] sm:$0xf]
    %v135 = vld [vmem:[#allocation2 + $0x170] sm:$0xf]
    %v136 = vld [vmem:[#allocation2 + $0x174] sm:$0xf]
    %v137 = vld [vmem:[#allocation2 + $0x178] sm:$0xf]
    %v138 = vld [vmem:[#allocation2 + $0x17c] sm:$0xf]
    %v139 = vld [vmem:[#allocation2 + $0x180] sm:$0xf]
    %v140 = vld [vmem:[#allocation2 + $0x184] sm:$0xf]
    %v141 = vld [vmem:[%s2] sm:$0x1]
    %v143 = vlaneseq
    %v144 = vshrl.u32 %v143, 7
    %v145 = vsub.s32 0, %v144
    %v146 = vrot.slane %v141, %v145
    %v156 = vunpack.c.l.b16 %v35
    %v157 = vunpack.c.h.b16 %v35
    %v158 = vunpack.c.l.b16 %v36
    %v159 = vunpack.c.h.b16 %v36
    %v160 = vunpack.c.l.b16 %v37
    %v161 = vunpack.c.h.b16 %v37
    %v162 = vunpack.c.l.b16 %v38
    %v163 = vunpack.c.l.b16 %v39
    %v164 = vunpack.c.h.b16 %v39
    %v165 = vunpack.c.l.b16 %v40
    %v166 = vunpack.c.h.b16 %v40
    %v167 = vunpack.c.l.b16 %v41
    %v168 = vunpack.c.h.b16 %v41
    %v169 = vunpack.c.l.b16 %v42
    %v170 = vpack.c.b16 %v163, %v156
    %v171 = vpack.c.b16 %v164, %v157
    %v172 = vpack.c.b16 %v165, %v158
    %v173 = vpack.c.b16 %v166, %v159
    %v174 = vpack.c.b16 %v167, %v160
    %v175 = vpack.c.b16 %v168, %v161
    %v176 = vpack.c.b16 %v169, %v162
    %v281 = vunpack.c.l.b16 %v43
    %v282 = vunpack.c.l.b16 %v44
    %v283 = vunpack.c.l.b16 %v45
    %v284 = vunpack.c.l.b16 %v46
    %v285 = vunpack.c.l.b16 %v47
    %v286 = vunpack.c.l.b16 %v48
    %v287 = vunpack.c.l.b16 %v49
    %v288 = vunpack.c.l.b16 %v50
    %v289 = vunpack.c.l.b16 %v51
    %v290 = vunpack.c.l.b16 %v52
    %v291 = vunpack.c.l.b16 %v53
    %v292 = vunpack.c.l.b16 %v54
    %v293 = vunpack.c.l.b16 %v55
    %v294 = vunpack.c.l.b16 %v56
    %v295 = vunpack.c.l.b16 %v57
    %v296 = vunpack.c.l.b16 %v58
    %v297 = vunpack.c.l.b16 %v59
    %v298 = vunpack.c.l.b16 %v60
    %v299 = vunpack.c.l.b16 %v61
    %v300 = vunpack.c.l.b16 %v62
    %v301 = vunpack.c.l.b16 %v63
    %v302 = vunpack.c.l.b16 %v64
    %v303 = vunpack.c.l.b16 %v65
    %v304 = vunpack.c.l.b16 %v66
    %v305 = vunpack.c.l.b16 %v67
    %v306 = vunpack.c.l.b16 %v68
    %v307 = vunpack.c.l.b16 %v69
    %v308 = vunpack.c.l.b16 %v70
    %v309 = vunpack.c.l.b16 %v71
    %v310 = vunpack.c.l.b16 %v72
    %v311 = vunpack.c.l.b16 %v73
    %v312 = vunpack.c.l.b16 %v74
    %v313 = vunpack.c.l.b16 %v75
    %v314 = vunpack.c.l.b16 %v76
    %v315 = vunpack.c.l.b16 %v77
    %v316 = vunpack.c.l.b16 %v78
    %v317 = vunpack.c.l.b16 %v79
    %v318 = vunpack.c.l.b16 %v80
    %v319 = vunpack.c.l.b16 %v81
    %v320 = vunpack.c.l.b16 %v82
    %v321 = vunpack.c.l.b16 %v83
    %v322 = vunpack.c.l.b16 %v84
    %v323 = vunpack.c.l.b16 %v85
    %v324 = vunpack.c.l.b16 %v86
    %v325 = vunpack.c.l.b16 %v87
    %v326 = vunpack.c.l.b16 %v88
    %v327 = vunpack.c.l.b16 %v89
    %v328 = vunpack.c.l.b16 %v90
    %v329 = vunpack.c.l.b16 %v91
    %v330 = vunpack.c.l.b16 %v92
    %v331 = vunpack.c.l.b16 %v93
    %v332 = vunpack.c.l.b16 %v94
    %v333 = vunpack.c.l.b16 %v95
    %v334 = vunpack.c.l.b16 %v96
    %v335 = vunpack.c.l.b16 %v97
    %v336 = vunpack.c.l.b16 %v98
    %v337 = vunpack.c.l.b16 %v99
    %v338 = vunpack.c.l.b16 %v100
    %v339 = vunpack.c.l.b16 %v101
    %v340 = vunpack.c.l.b16 %v102
    %v341 = vunpack.c.l.b16 %v103
    %v342 = vunpack.c.l.b16 %v104
    %v343 = vunpack.c.l.b16 %v105
    %v344 = vunpack.c.l.b16 %v106
    %v345 = vunpack.c.l.b16 %v107
    %v346 = vunpack.c.l.b16 %v108
    %v347 = vunpack.c.l.b16 %v109
    %v348 = vunpack.c.l.b16 %v110
    %v349 = vunpack.c.l.b16 %v111
    %v350 = vunpack.c.l.b16 %v112
    %v351 = vunpack.c.l.b16 %v113
    %v352 = vunpack.c.l.b16 %v114
    %v353 = vunpack.c.l.b16 %v115
    %v354 = vunpack.c.l.b16 %v116
    %v355 = vunpack.c.l.b16 %v117
    %v356 = vunpack.c.l.b16 %v118
    %v357 = vunpack.c.l.b16 %v119
    %v358 = vunpack.c.l.b16 %v120
    %v359 = vunpack.c.l.b16 %v121
    %v360 = vunpack.c.l.b16 %v122
    %v361 = vunpack.c.l.b16 %v123
    %v362 = vunpack.c.l.b16 %v124
    %v363 = vunpack.c.l.b16 %v125
    %v364 = vunpack.c.l.b16 %v126
    %v365 = vunpack.c.l.b16 %v127
    %v366 = vunpack.c.l.b16 %v128
    %v367 = vunpack.c.l.b16 %v129
    %v368 = vunpack.c.l.b16 %v130
    %v369 = vunpack.c.l.b16 %v131
    %v370 = vunpack.c.l.b16 %v132
    %v371 = vunpack.c.l.b16 %v133
    %v372 = vunpack.c.l.b16 %v134
    %v373 = vunpack.c.l.b16 %v135
    %v374 = vunpack.c.l.b16 %v136
    %v375 = vunpack.c.l.b16 %v137
    %v376 = vunpack.c.l.b16 %v138
    %v377 = vunpack.c.l.b16 %v139
    %v378 = vunpack.c.l.b16 %v140
    %v379 = vpack.c.b16 %v282, %v281
    %v380 = vpack.c.b16 %v284, %v283
    %v381 = vpack.c.b16 %v286, %v285
    %v382 = vpack.c.b16 %v288, %v287
    %v383 = vpack.c.b16 %v290, %v289
    %v384 = vpack.c.b16 %v292, %v291
    %v385 = vpack.c.b16 %v294, %v293
    %v386 = vpack.c.b16 %v296, %v295
    %v387 = vpack.c.b16 %v298, %v297
    %v388 = vpack.c.b16 %v300, %v299
    %v389 = vpack.c.b16 %v302, %v301
    %v390 = vpack.c.b16 %v304, %v303
    %v391 = vpack.c.b16 %v306, %v305
    %v392 = vpack.c.b16 %v308, %v307
    %v393 = vpack.c.b16 %v310, %v309
    %v394 = vpack.c.b16 %v312, %v311
    %v395 = vpack.c.b16 %v314, %v313
    %v396 = vpack.c.b16 %v316, %v315
    %v397 = vpack.c.b16 %v318, %v317
    %v398 = vpack.c.b16 %v320, %v319
    %v399 = vpack.c.b16 %v322, %v321
    %v400 = vpack.c.b16 %v324, %v323
    %v401 = vpack.c.b16 %v326, %v325
    %v402 = vpack.c.b16 %v328, %v327
    %v403 = vpack.c.b16 %v330, %v329
    %v404 = vpack.c.b16 %v332, %v331
    %v405 = vpack.c.b16 %v334, %v333
    %v406 = vpack.c.b16 %v336, %v335
    %v407 = vpack.c.b16 %v338, %v337
    %v408 = vpack.c.b16 %v340, %v339
    %v409 = vpack.c.b16 %v342, %v341
    %v410 = vpack.c.b16 %v344, %v343
    %v411 = vpack.c.b16 %v346, %v345
    %v412 = vpack.c.b16 %v348, %v347
    %v413 = vpack.c.b16 %v350, %v349
    %v414 = vpack.c.b16 %v352, %v351
    %v415 = vpack.c.b16 %v354, %v353
    %v416 = vpack.c.b16 %v356, %v355
    %v417 = vpack.c.b16 %v358, %v357
    %v418 = vpack.c.b16 %v360, %v359
    %v419 = vpack.c.b16 %v362, %v361
    %v420 = vpack.c.b16 %v364, %v363
    %v421 = vpack.c.b16 %v366, %v365
    %v422 = vpack.c.b16 %v368, %v367
    %v423 = vpack.c.b16 %v370, %v369
    %v424 = vpack.c.b16 %v372, %v371
    %v425 = vpack.c.b16 %v374, %v373
    %v426 = vpack.c.b16 %v376, %v375
    %v427 = vpack.c.b16 %v378, %v377
    %vm477 = vcmask 130048
    %v479 = vsel %vm477, %v176, 0
    %481 = vmatprep.subr.bf16.mxu0 0
    %482 = vmatpush1.bf16.msra.mxu0 %v379
    %483 = vmatprep.subr.bf16.mxu0 0
    %484 = vmatpush1.bf16.msra.mxu0 %v380
    %485 = vmatprep.subr.bf16.mxu0 0
    %486 = vmatpush1.bf16.msra.mxu0 %v381
    %487 = vmatprep.subr.bf16.mxu0 0
    %488 = vmatpush1.bf16.msra.mxu0 %v382
    %489 = vmatprep.subr.bf16.mxu0 0
    %490 = vmatpush1.bf16.msra.mxu0 %v383
    %491 = vmatprep.subr.bf16.mxu0 0
    %492 = vmatpush1.bf16.msra.mxu0 %v384
    %493 = vmatprep.subr.bf16.mxu0 0
    %494 = vmatpush1.bf16.msra.mxu0 %v385
    %495 = vmatprep.subr.bf16.mxu0 0
    %496 = vmatpush1.bf16.msra.mxu0 %v386
    %497 = vmatprep.subr.bf16.mxu0 0
    %498 = vmatpush1.bf16.msra.mxu0 %v387
    %499 = vmatprep.subr.bf16.mxu0 0
    %500 = vmatpush1.bf16.msra.mxu0 %v388
    %501 = vmatprep.subr.bf16.mxu0 0
    %502 = vmatpush1.bf16.msra.mxu0 %v389
    %503 = vmatprep.subr.bf16.mxu0 0
    %504 = vmatpush1.bf16.msra.mxu0 %v390
    %505 = vmatprep.subr.bf16.mxu0 0
    %506 = vmatpush1.bf16.msra.mxu0 %v391
    %507 = vmatprep.subr.bf16.mxu0 0
    %508 = vmatpush1.bf16.msra.mxu0 %v392
    %509 = vmatprep.subr.bf16.mxu0 0
    %510 = vmatpush1.bf16.msra.mxu0 %v393
    %511 = vmatprep.subr.bf16.mxu0 0
    %512 = vmatpush1.bf16.msra.mxu0 %v394
    %513 = vmatprep.mubr.bf16.mxu0 %v171
    %514 = vmatmul.mubr.bf16.gmra.mrb[0].mxu0 %v170
    %v515 = vpop.f32.mrb[0].mxu0
    %v516 = vadd.f32 %v146, %v515
    %v517 = vpop.f32.mrb[0].mxu0
    %v518 = vpop.f32.mrb[0].mxu0
    %v519 = vadd.f32 %v146, %v518
    %v520 = vpop.f32.mrb[0].mxu0
    %521 = vdwg.mxu0
    %522 = vmatprep.subr.bf16.mxu0 0
    %523 = vmatpush1.bf16.msra.mxu0 %v395
    %524 = vmatprep.subr.bf16.mxu0 0
    %525 = vmatpush1.bf16.msra.mxu0 %v396
    %526 = vmatprep.subr.bf16.mxu0 0
    %527 = vmatpush1.bf16.msra.mxu0 %v397
    %528 = vmatprep.subr.bf16.mxu0 0
    %529 = vmatpush1.bf16.msra.mxu0 %v398
    %530 = vmatprep.subr.bf16.mxu0 0
    %531 = vmatpush1.bf16.msra.mxu0 %v399
    %532 = vmatprep.subr.bf16.mxu0 0
    %533 = vmatpush1.bf16.msra.mxu0 %v400
    %534 = vmatprep.subr.bf16.mxu0 0
    %535 = vmatpush1.bf16.msra.mxu0 %v401
    %536 = vmatprep.subr.bf16.mxu0 0
    %537 = vmatpush1.bf16.msra.mxu0 %v402
    %538 = vmatprep.subr.bf16.mxu0 0
    %539 = vmatpush1.bf16.msra.mxu0 %v403
    %540 = vmatprep.subr.bf16.mxu0 0
    %541 = vmatpush1.bf16.msra.mxu0 %v404
    %542 = vmatprep.subr.bf16.mxu0 0
    %543 = vmatpush1.bf16.msra.mxu0 %v405
    %544 = vmatprep.subr.bf16.mxu0 0
    %545 = vmatpush1.bf16.msra.mxu0 %v406
    %546 = vmatprep.subr.bf16.mxu0 0
    %547 = vmatpush1.bf16.msra.mxu0 %v407
    %548 = vmatprep.subr.bf16.mxu0 0
    %549 = vmatpush1.bf16.msra.mxu0 %v408
    %550 = vmatprep.subr.bf16.mxu0 0
    %551 = vmatpush1.bf16.msra.mxu0 %v409
    %552 = vmatprep.subr.bf16.mxu0 0
    %553 = vmatpush1.bf16.msra.mxu0 %v410
    %554 = vmatprep.mubr.bf16.mxu0 %v173
    %555 = vmatmul.mubr.bf16.gmra.mrb[0].mxu0 %v172
    %v556 = vpop.f32.mrb[0].mxu0
    %v557 = vadd.f32 %v516, %v556
    %v558 = vpop.f32.mrb[0].mxu0
    %v559 = vpop.f32.mrb[0].mxu0
    %v560 = vadd.f32 %v519, %v559
    %v561 = vpop.f32.mrb[0].mxu0
    %562 = vdwg.mxu0
    %563 = vmatprep.subr.bf16.mxu0 0
    %564 = vmatpush1.bf16.msra.mxu0 %v411
    %565 = vmatprep.subr.bf16.mxu0 0
    %566 = vmatpush1.bf16.msra.mxu0 %v412
    %567 = vmatprep.subr.bf16.mxu0 0
    %568 = vmatpush1.bf16.msra.mxu0 %v413
    %569 = vmatprep.subr.bf16.mxu0 0
    %570 = vmatpush1.bf16.msra.mxu0 %v414
    %571 = vmatprep.subr.bf16.mxu0 0
    %572 = vmatpush1.bf16.msra.mxu0 %v415
    %573 = vmatprep.subr.bf16.mxu0 0
    %574 = vmatpush1.bf16.msra.mxu0 %v416
    %575 = vmatprep.subr.bf16.mxu0 0
    %576 = vmatpush1.bf16.msra.mxu0 %v417
    %577 = vmatprep.subr.bf16.mxu0 0
    %578 = vmatpush1.bf16.msra.mxu0 %v418
    %579 = vmatprep.subr.bf16.mxu0 0
    %580 = vmatpush1.bf16.msra.mxu0 %v419
    %581 = vmatprep.subr.bf16.mxu0 0
    %582 = vmatpush1.bf16.msra.mxu0 %v420
    %583 = vmatprep.subr.bf16.mxu0 0
    %584 = vmatpush1.bf16.msra.mxu0 %v421
    %585 = vmatprep.subr.bf16.mxu0 0
    %586 = vmatpush1.bf16.msra.mxu0 %v422
    %587 = vmatprep.subr.bf16.mxu0 0
    %588 = vmatpush1.bf16.msra.mxu0 %v423
    %589 = vmatprep.subr.bf16.mxu0 0
    %590 = vmatpush1.bf16.msra.mxu0 %v424
    %591 = vmatprep.subr.bf16.mxu0 0
    %592 = vmatpush1.bf16.msra.mxu0 %v425
    %593 = vmatprep.subr.bf16.mxu0 0
    %594 = vmatpush1.bf16.msra.mxu0 %v426
    %595 = vmatprep.mubr.bf16.mxu0 %v175
    %596 = vmatmul.mubr.bf16.gmra.mrb[0].mxu0 %v174
    %v597 = vpop.f32.mrb[0].mxu0
    %v598 = vadd.f32 %v557, %v597
    %v599 = vpop.f32.mrb[0].mxu0
    %v600 = vpop.f32.mrb[0].mxu0
    %v601 = vadd.f32 %v560, %v600
    %v602 = vpop.f32.mrb[0].mxu0
    %603 = vdwg.mxu0
    %604 = vmatprep.subr.bf16.mxu0 0
    %605 = vmatpush1.bf16.msra.mxu0 %v427
    %606 = vmatprep.subr.bf16.mxu0 0
    %607 = vmatpush1.bf16.msra.mxu0 0
    %608 = vmatprep.subr.bf16.mxu0 0
    %609 = vmatpush1.bf16.msra.mxu0 0
    %610 = vmatprep.subr.bf16.mxu0 0
    %611 = vmatpush1.bf16.msra.mxu0 0
    %612 = vmatprep.subr.bf16.mxu0 0
    %613 = vmatpush1.bf16.msra.mxu0 0
    %614 = vmatprep.subr.bf16.mxu0 0
    %615 = vmatpush1.bf16.msra.mxu0 0
    %616 = vmatprep.subr.bf16.mxu0 0
    %617 = vmatpush1.bf16.msra.mxu0 0
    %618 = vmatprep.subr.bf16.mxu0 0
    %619 = vmatpush1.bf16.msra.mxu0 0
    %620 = vmatprep.subr.bf16.mxu0 0
    %621 = vmatpush1.bf16.msra.mxu0 0
    %622 = vmatprep.subr.bf16.mxu0 0
    %623 = vmatpush1.bf16.msra.mxu0 0
    %624 = vmatprep.subr.bf16.mxu0 0
    %625 = vmatpush1.bf16.msra.mxu0 0
    %626 = vmatprep.subr.bf16.mxu0 0
    %627 = vmatpush1.bf16.msra.mxu0 0
    %628 = vmatprep.subr.bf16.mxu0 0
    %629 = vmatpush1.bf16.msra.mxu0 0
    %630 = vmatprep.subr.bf16.mxu0 0
    %631 = vmatpush1.bf16.msra.mxu0 0
    %632 = vmatprep.subr.bf16.mxu0 0
    %633 = vmatpush1.bf16.msra.mxu0 0
    %634 = vmatprep.subr.bf16.mxu0 0
    %635 = vmatpush1.bf16.msra.mxu0 0
    %636 = vmatprep.mubr.bf16.mxu0 0
    %637 = vmatmul.mubr.bf16.gmra.mrb[0].mxu0 %v479
    %v638 = vpop.f32.mrb[0].mxu0
    %v639 = vadd.f32 %v598, %v638
    %v640 = vpop.f32.mrb[0].mxu0
    %v641 = vpop.f32.mrb[0].mxu0
    %v642 = vadd.f32 %v601, %v641
    %v643 = vpop.f32.mrb[0].mxu0
    %644 = vdwg.mxu0
    %v645 = vmax.f32 %v639, 0.0
    %v646 = vmax.f32 %v642, 0.0
    %v647 = vld [vmem:[%s3] sm:$0xff]
    %v648 = vld [vmem:[%s3 + $0x8] sm:$0xff]
    %v649 = vld [vmem:[%s3 + $0x10] sm:$0xff]
    %v650 = vld [vmem:[%s3 + $0x18] sm:$0xff]
    %v651 = vld [vmem:[%s3 + $0x20] sm:$0xff]
    %v652 = vld [vmem:[%s3 + $0x28] sm:$0xff]
    %v653 = vld [vmem:[%s3 + $0x30] sm:$0xff]
    %v654 = vld [vmem:[%s3 + $0x38] sm:$0xff]
    %v655 = vld [vmem:[%s3 + $0x40] sm:$0xff]
    %v656 = vld [vmem:[%s3 + $0x48] sm:$0xff]
    %v657 = vld [vmem:[%s3 + $0x50] sm:$0xff]
    %v658 = vld [vmem:[%s3 + $0x58] sm:$0xff]
    %v659 = vld [vmem:[%s3 + $0x60] sm:$0xff]
    %v660 = vld [vmem:[%s3 + $0x68] sm:$0xff]
    %v661 = vld [vmem:[%s3 + $0x70] sm:$0xff]
    %v662 = vld [vmem:[%s3 + $0x78] sm:$0xff]
    %v663 = vld [vmem:[%s4] sm:$0x1]
    %v665 = vlaneseq
    %v666 = vshrl.u32 %v665, 7
    %v667 = vsub.s32 0, %v666
    %v668 = vrot.slane %v663, %v667
    %670 = vmatprep.subr.mxu0 0.0
    %671 = vmatpush1.msra.mxu0 %v647
    %672 = vmatprep.subr.mxu0 0.0
    %673 = vmatpush1.msra.mxu0 %v648
    %674 = vmatprep.subr.mxu0 0.0
    %675 = vmatpush1.msra.mxu0 %v649
    %676 = vmatprep.subr.mxu0 0.0
    %677 = vmatpush1.msra.mxu0 %v650
    %678 = vmatprep.subr.mxu0 0.0
    %679 = vmatpush1.msra.mxu0 %v651
    %680 = vmatprep.subr.mxu0 0.0
    %681 = vmatpush1.msra.mxu0 %v652
    %682 = vmatprep.subr.mxu0 0.0
    %683 = vmatpush1.msra.mxu0 %v653
    %684 = vmatprep.subr.mxu0 0.0
    %685 = vmatpush1.msra.mxu0 %v654
    %686 = vmatprep.subr.mxu0 0.0
    %687 = vmatpush1.msra.mxu0 %v655
    %688 = vmatprep.subr.mxu0 0.0
    %689 = vmatpush1.msra.mxu0 %v656
    %690 = vmatprep.subr.mxu0 0.0
    %691 = vmatpush1.msra.mxu0 %v657
    %692 = vmatprep.subr.mxu0 0.0
    %693 = vmatpush1.msra.mxu0 %v658
    %694 = vmatprep.subr.mxu0 0.0
    %695 = vmatpush1.msra.mxu0 %v659
    %696 = vmatprep.subr.mxu0 0.0
    %697 = vmatpush1.msra.mxu0 %v660
    %698 = vmatprep.subr.mxu0 0.0
    %699 = vmatpush1.msra.mxu0 %v661
    %700 = vmatprep.subr.mxu0 0.0
    %701 = vmatpush1.msra.mxu0 %v662
    %702 = vmatprep.subr.mxu0 0.0
    %703 = vmatpush1.msra.mxu0 0.0
    %704 = vmatprep.subr.mxu0 0.0
    %705 = vmatpush1.msra.mxu0 0.0
    %706 = vmatprep.subr.mxu0 0.0
    %707 = vmatpush1.msra.mxu0 0.0
    %708 = vmatprep.subr.mxu0 0.0
    %709 = vmatpush1.msra.mxu0 0.0
    %710 = vmatprep.subr.mxu0 0.0
    %711 = vmatpush1.msra.mxu0 0.0
    %712 = vmatprep.subr.mxu0 0.0
    %713 = vmatpush1.msra.mxu0 0.0
    %714 = vmatprep.subr.mxu0 0.0
    %715 = vmatpush1.msra.mxu0 0.0
    %716 = vmatprep.subr.mxu0 0.0
    %717 = vmatpush1.msra.mxu0 0.0
    %718 = vmatprep.subr.mxu0 0.0
    %719 = vmatpush1.msra.mxu0 0.0
    %720 = vmatprep.subr.mxu0 0.0
    %721 = vmatpush1.msra.mxu0 0.0
    %722 = vmatprep.subr.mxu0 0.0
    %723 = vmatpush1.msra.mxu0 0.0
    %724 = vmatprep.subr.mxu0 0.0
    %725 = vmatpush1.msra.mxu0 0.0
    %726 = vmatprep.subr.mxu0 0.0
    %727 = vmatpush1.msra.mxu0 0.0
    %728 = vmatprep.subr.mxu0 0.0
    %729 = vmatpush1.msra.mxu0 0.0
    %730 = vmatprep.subr.mxu0 0.0
    %731 = vmatpush1.msra.mxu0 0.0
    %732 = vmatprep.subr.mxu0 0.0
    %733 = vmatpush1.msra.mxu0 0.0
    %734 = vmatprep.mubr.f32.mxu0 0.0
    %735 = vmatmul.mubr.f32.gmra.mrb[0].mxu0 %v645
    %v736 = vpop.f32.mrb[0].mxu0
    %v737 = vadd.f32 %v668, %v736
    %v738 = vpop.f32.mrb[0].mxu0
    %739 = vmatprep.mubr.f32.mxu0 0.0
    %740 = vmatmul.mubr.f32.gmra.mrb[0].mxu0 %v646
    %v741 = vpop.f32.mrb[0].mxu0
    %v742 = vadd.f32 %v668, %v741
    %v743 = vpop.f32.mrb[0].mxu0
    %744 = vdwg.mxu0
    %v745 = vmax.f32 %v737, 0.0
    %v746 = vmax.f32 %v742, 0.0
    %v747 = vlaneseq
    %v748 = vand.u32 %v747, 127
    %vm749 = vcmp.lt.s32.totalorder %v748, 10
    %v750 = vsel %vm749, %v745, -1e+30
    %v751 = vsel %vm749, %v746, -1e+30
    %752 = vmax.xlane.f32.xlu0 %v750
    %v753 = vpop.xlane.xlu0 %752
    %754 = vmax.xlane.f32.xlu0 %v751
    %v755 = vpop.xlane.xlu0 %754
    %v756 = vsub.f32 %v750, %v753
    %v757 = vsub.f32 %v751, %v755
    %v758 = vmul.f32 %v756, 1.442695
    %v759 = vpow.pop %v758
    %v760 = vmul.f32 %v757, 1.442695
    %v761 = vpow.pop %v760
    %762 = vadd.xlane.f32.xlu0 %v759
    %v763 = vpop.xlane.xlu0 %762
    %764 = vadd.xlane.f32.xlu0 %v761
    %v765 = vpop.xlane.xlu0 %764
    %v766 = vlog2.pop %v763
    %v767 = vmul.f32 %v766, 0.6931472
    %v768 = vlog2.pop %v765
    %v769 = vmul.f32 %v768, 0.6931472
    %v770 = vsub.f32 %v756, %v767
    %v771 = vsub.f32 %v757, %v769
    %v772 = vpack.c.bf16 %v771, %v770
    %v774 = vunpack.c.l.b16 %v772
    %v775 = vunpack.c.h.b16 %v772
    %v776 = vpack.c.b16 %v774, %v774
    %v777 = vpack.c.b16 %v775, %v775
    %780 = vst [vmem:[%s5] sm:$0xf] %v776
    %781 = vst [vmem:[%s5 + $0x4] sm:$0xf] %v777
    // Predicated region
    $region26: #{mlp_forward.1} parent=1 // pred_check
      _
    $region27: #{mlp_forward.1} parent=1 // pred_check_branch
      %783 = sbr.rel (0) target = $region29
    $region28: #{mlp_forward.1} parent=1 // pred_region
      _
    $region29: #{mlp_forward.1} parent=1 // pred_fallthru
      _
    // Predicated region
    $region30: #{mlp_forward.1} parent=1 // pred_check
      _
    $region31: #{mlp_forward.1} parent=1 // pred_check_branch
      %785 = sbr.rel (0) target = $region33
    $region32: #{mlp_forward.1} parent=1 // pred_region
      _
    $region33: #{mlp_forward.1} parent=1 // pred_fallthru
      _
    %786 = vsyncpa [#allocation3], 1

</llo_original>
